<compile_context>
chip_gen: v6e
topology: v6e:2x2x1
jax: 0.10.0
libtpu: 0.0.40
codegen_flags: <defaults>
</compile_context>

<pallas_src>
import jax
import jax.numpy as jnp
from jax.experimental import pallas as pl
from jax.experimental.pallas import tpu as pltpu

REPEATS = 8


def _repeat_cat_kernel(x_ref, o_ref):
    # Read the input tile once, broadcast it across the repeat (sublane) axis
    # of the lane-dense output tile. One wide unmasked store instead of 8
    # lane-sparse grid writebacks.
    x = x_ref[...]                                      # (N, tile_f)
    o_ref[...] = jnp.broadcast_to(x[:, None, :], o_ref.shape)


def _pick_tile_f(F, n_rows, dtype_bytes, target_in_bytes=1 << 20):
    """Largest multiple-of-128 divisor of F giving ~target_in_bytes input tile."""
    if F % 128 != 0:
        # Full-extent block is always legal under the (8,128) rule.
        return F
    max_elems = max(128, target_in_bytes // max(1, n_rows * dtype_bytes))
    tile = min(F, (max_elems // 128) * 128)
    tile = max(tile, 128)
    while F % tile != 0:
        tile -= 128
    return tile


def cat_channels_x8(x):
    """torch.cat([x]*8, dim=1) for NCHW input, as a read-once broadcast copy."""
    N, C, H, W = x.shape
    F = C * H * W
    dtype_bytes = jnp.dtype(x.dtype).itemsize

    # Lane-dense flat view (free reshape for contiguous NCHW).
    x_flat = x.reshape(N, F)

    tile_f = _pick_tile_f(F, N, dtype_bytes)
    grid = (F // tile_f,)

    in_tile_bytes = N * tile_f * dtype_bytes
    out_tile_bytes = REPEATS * in_tile_bytes
    # Double-buffered input + output tiles plus headroom; never go below the
    # 32 MiB scoped default (only ever raise the budget).
    vmem_limit = max(32 << 20, 2 * (in_tile_bytes + out_tile_bytes) + (2 << 20))
    vmem_limit = min(vmem_limit, 100 << 20)

    out_flat = pl.pallas_call(
        _repeat_cat_kernel,
        out_shape=jax.ShapeDtypeStruct((N, REPEATS, F), x.dtype),
        grid_spec=pltpu.PrefetchScalarGridSpec(
            num_scalar_prefetch=0,
            grid=grid,
            in_specs=[
                pl.BlockSpec((N, tile_f), lambda f: (0, f)),
            ],
            out_specs=pl.BlockSpec((N, REPEATS, tile_f), lambda f: (0, 0, f)),
        ),
        compiler_params=pltpu.CompilerParams(
            dimension_semantics=("parallel",),
            vmem_limit_bytes=int(vmem_limit),
        ),
    )(x_flat)

    # (N, 8, C*H*W) -> (N, 8*C, H, W): contiguous reshape, exactly matches
    # torch.cat([x]*8, dim=1) memory layout.
    return out_flat.reshape(N, REPEATS * C, H, W)


def reference(x):
    return jnp.concatenate([x] * REPEATS, axis=1)


if __name__ == "__main__":
    key = jax.random.PRNGKey(0)
    k1, k2 = jax.random.split(key)

    # Shape from the original module spec: x2 = torch.randn(1, 3, 64, 64).
    x_a = jax.random.normal(k1, (1, 3, 64, 64), dtype=jnp.float32)
    out_a = jax.block_until_ready(cat_channels_x8(x_a))
    assert out_a.shape == (1, 24, 64, 64), out_a.shape
    assert jnp.array_equal(out_a, reference(x_a)), "mismatch vs reference (1,3,64,64)"

    # Small secondary shape to exercise N > 1.
    x_b = jax.random.normal(k2, (2, 4, 16, 16), dtype=jnp.float32)
    out_b = jax.block_until_ready(cat_channels_x8(x_b))
    assert out_b.shape == (2, 32, 16, 16), out_b.shape
    assert jnp.array_equal(out_b, reference(x_b)), "mismatch vs reference (2,4,16,16)"

    print("KERNEL_OK")
</pallas_src>

<mosaic_0001>
module attributes {stable_mosaic.version = 11 : i64} {
  func.func @_repeat_cat_kernel(%arg0: i32, %arg1: memref<1x12288xf32, #tpu.memory_space<vmem>>, %arg2: memref<1x8x12288xf32, #tpu.memory_space<vmem>>) attributes {dimension_semantics = [#tpu.dimension_semantics<parallel>], iteration_bounds = array<i64: 1>, scalar_prefetch = 0 : i64, scratch_operands = 0 : i64, tpu.core_type = #tpu.core_type<tc>, window_params = [{transform_indices = @transform_0, window_bounds = array<i64: 1, 12288>}, {transform_indices = @transform_1, window_bounds = array<i64: 1, 8, 12288>}]} {
    %c0 = arith.constant 0 : index
    %c0_0 = arith.constant 0 : index
    %0 = vector.load %arg1[%c0, %c0_0] : memref<1x12288xf32, #tpu.memory_space<vmem>>, vector<1x12288xf32>
    %1 = vector.shape_cast %0 : vector<1x12288xf32> to vector<1x1x12288xf32>
    %2 = vector.shape_cast %1 : vector<1x1x12288xf32> to vector<1x1x12288xf32>
    %3 = vector.broadcast %2 : vector<1x1x12288xf32> to vector<1x8x12288xf32>
    %c0_1 = arith.constant 0 : index
    %c0_2 = arith.constant 0 : index
    %c0_3 = arith.constant 0 : index
    %4 = vector.load %arg2[%c0_1, %c0_2, %c0_3] : memref<1x8x12288xf32, #tpu.memory_space<vmem>>, vector<1x8x12288xf32>
    tpu.vector_store %arg2[%c0_1, %c0_2, %c0_3], %3 {strides = array<i32>} : memref<1x8x12288xf32, #tpu.memory_space<vmem>>, vector<1x8x12288xf32>,
    return
  }
  func.func @transform_0(%arg0: i32) -> (i32, i32) {
    %c0_i32 = arith.constant 0 : i32
    %c0_i32_0 = arith.constant 0 : i32
    return %c0_i32, %arg0 : i32, i32
  }
  func.func @transform_1(%arg0: i32) -> (i32, i32, i32) {
    %c0_i32 = arith.constant 0 : i32
    %c0_i32_0 = arith.constant 0 : i32
    %c0_i32_1 = arith.constant 0 : i32
    return %c0_i32, %c0_i32_0, %arg0 : i32, i32, i32
  }
}

</mosaic_0001>

<llo_original>
// kernel: tpu_custom_call.1
$region0: #{tpu_custom_call.1}
  #allocation0 [shape = 'u32[]', space=smem, size = 0x4, offset = 0x4, fixed_abs, tag = 'smem constant byte address 0x4 - core index']
  #allocation1 [shape = 'u32[144,128]{1,0:T(1,128)}', space=vmem, size = 0x12000, scoped, tag = 'internal scratch']
  %s0 = inlined_call_operand.hbm [shape: f32[1,12288], index: 0, kind: input, shape index: {}]
  %s1 = inlined_call_operand.hbm [shape: f32[1,8,12288], index: 1, kind: output, shape index: {}]
  %s2 = sld [smem:[#allocation0]]
  $region18: #{tpu_custom_call.1} parent=0
    _
  %s4 = ssub.s32 1, %s2
  %s5 = scalar_select 0, %s4, %s2
  $region1: #{tpu_custom_call.1} parent=0
    #allocation2 [shape = 'u8[49152]{0}', space=vmem, size = 0xc000, scoped, tag = 'input window, operand 0, single buffered']
    #allocation3 [shape = 's32[1]{0}', space=sflag, size = 0x4, scoped, tag = 'scoped memory for tpu_custom_call.1']
    #allocation4 [shape = 's32[1]{0}', space=sflag, size = 0x4, scoped, tag = 'scoped memory for tpu_custom_call.1']
    #allocation5 [shape = 'u8[393216]{0}', space=vmem, size = 0x60000, scoped, tag = 'output window, operand 0, single buffered']
    %6 = vsyncpa [#allocation3], 0
    %7 = vsyncpa [#allocation4], 0
    // Predicated region
    $region2: #{tpu_custom_call.1} parent=1 // pred_check
      _
    $region3: #{tpu_custom_call.1} parent=1 // pred_check_branch
      %9 = sbr.rel (0) target = $region5
    $region4: #{tpu_custom_call.1} parent=1 // pred_region
      %s11 = ssub.s32 1536, 1536
      %12 = vsyncadd [#allocation3], %s11
      %s14 = sshll.u32 [#allocation2], 4
      %s15 = int_to_ptr.vmem [resolvable:$true] %s14
      %17 = dma.hbm_to_vmem [thread:$0]  %s0, 1536, %s15, [#allocation3]
    $region5: #{tpu_custom_call.1} parent=1 // pred_fallthru
      _
    // Predicated region
    $region6: #{tpu_custom_call.1} parent=1 // pred_check
      _
    $region7: #{tpu_custom_call.1} parent=1 // pred_check_branch
      %19 = sbr.rel (0) target = $region9
    $region8: #{tpu_custom_call.1} parent=1 // pred_region
      %20 = dma.done [#allocation3], 1536
    $region9: #{tpu_custom_call.1} parent=1 // pred_fallthru
      _
    %v21 = vld [vmem:[#allocation2] sm:$0xff]
    %v22 = vld [vmem:[#allocation2 + $0x8] sm:$0xff]
    %v23 = vld [vmem:[#allocation2 + $0x10] sm:$0xff]
    %v24 = vld [vmem:[#allocation2 + $0x18] sm:$0xff]
    %v25 = vld [vmem:[#allocation2 + $0x20] sm:$0xff]
    %v26 = vld [vmem:[#allocation2 + $0x28] sm:$0xff]
    %v27 = vld [vmem:[#allocation2 + $0x30] sm:$0xff]
    %v28 = vld [vmem:[#allocation2 + $0x38] sm:$0xff]
    %v29 = vld [vmem:[#allocation2 + $0x40] sm:$0xff]
    %v30 = vld [vmem:[#allocation2 + $0x48] sm:$0xff]
    %v31 = vld [vmem:[#allocation2 + $0x50] sm:$0xff]
    %v32 = vld [vmem:[#allocation2 + $0x58] sm:$0xff]
    %v45 = vlaneseq
    %v46 = vshrl.u32 %v45, 7
    %v47 = vsub.s32 0, %v46
    %v48 = vrot.slane %v21, %v47
    %v49 = vlaneseq
    %v50 = vshrl.u32 %v49, 7
    %v51 = vsub.s32 1, %v50
    %v52 = vrot.slane %v21, %v51
    %v53 = vlaneseq
    %v54 = vshrl.u32 %v53, 7
    %v55 = vsub.s32 2, %v54
    %v56 = vrot.slane %v21, %v55
    %v57 = vlaneseq
    %v58 = vshrl.u32 %v57, 7
    %v59 = vsub.s32 3, %v58
    %v60 = vrot.slane %v21, %v59
    %v61 = vlaneseq
    %v62 = vshrl.u32 %v61, 7
    %v63 = vsub.s32 4, %v62
    %v64 = vrot.slane %v21, %v63
    %v65 = vlaneseq
    %v66 = vshrl.u32 %v65, 7
    %v67 = vsub.s32 5, %v66
    %v68 = vrot.slane %v21, %v67
    %v69 = vlaneseq
    %v70 = vshrl.u32 %v69, 7
    %v71 = vsub.s32 6, %v70
    %v72 = vrot.slane %v21, %v71
    %v73 = vlaneseq
    %v74 = vshrl.u32 %v73, 7
    %v75 = vsub.s32 7, %v74
    %v76 = vrot.slane %v21, %v75
    %v77 = vlaneseq
    %v78 = vshrl.u32 %v77, 7
    %v79 = vsub.s32 0, %v78
    %v80 = vrot.slane %v22, %v79
    %v81 = vlaneseq
    %v82 = vshrl.u32 %v81, 7
    %v83 = vsub.s32 1, %v82
    %v84 = vrot.slane %v22, %v83
    %v85 = vlaneseq
    %v86 = vshrl.u32 %v85, 7
    %v87 = vsub.s32 2, %v86
    %v88 = vrot.slane %v22, %v87
    %v89 = vlaneseq
    %v90 = vshrl.u32 %v89, 7
    %v91 = vsub.s32 3, %v90
    %v92 = vrot.slane %v22, %v91
    %v93 = vlaneseq
    %v94 = vshrl.u32 %v93, 7
    %v95 = vsub.s32 4, %v94
    %v96 = vrot.slane %v22, %v95
    %v97 = vlaneseq
    %v98 = vshrl.u32 %v97, 7
    %v99 = vsub.s32 5, %v98
    %v100 = vrot.slane %v22, %v99
    %v101 = vlaneseq
    %v102 = vshrl.u32 %v101, 7
    %v103 = vsub.s32 6, %v102
    %v104 = vrot.slane %v22, %v103
    %v105 = vlaneseq
    %v106 = vshrl.u32 %v105, 7
    %v107 = vsub.s32 7, %v106
    %v108 = vrot.slane %v22, %v107
    %v109 = vlaneseq
    %v110 = vshrl.u32 %v109, 7
    %v111 = vsub.s32 0, %v110
    %v112 = vrot.slane %v23, %v111
    %v113 = vlaneseq
    %v114 = vshrl.u32 %v113, 7
    %v115 = vsub.s32 1, %v114
    %v116 = vrot.slane %v23, %v115
    %v117 = vlaneseq
    %v118 = vshrl.u32 %v117, 7
    %v119 = vsub.s32 2, %v118
    %v120 = vrot.slane %v23, %v119
    %v121 = vlaneseq
    %v122 = vshrl.u32 %v121, 7
    %v123 = vsub.s32 3, %v122
    %v124 = vrot.slane %v23, %v123
    %v125 = vlaneseq
    %v126 = vshrl.u32 %v125, 7
    %v127 = vsub.s32 4, %v126
    %v128 = vrot.slane %v23, %v127
    %v129 = vlaneseq
    %v130 = vshrl.u32 %v129, 7
    %v131 = vsub.s32 5, %v130
    %v132 = vrot.slane %v23, %v131
    %v133 = vlaneseq
    %v134 = vshrl.u32 %v133, 7
    %v135 = vsub.s32 6, %v134
    %v136 = vrot.slane %v23, %v135
    %v137 = vlaneseq
    %v138 = vshrl.u32 %v137, 7
    %v139 = vsub.s32 7, %v138
    %v140 = vrot.slane %v23, %v139
    %v141 = vlaneseq
    %v142 = vshrl.u32 %v141, 7
    %v143 = vsub.s32 0, %v142
    %v144 = vrot.slane %v24, %v143
    %v145 = vlaneseq
    %v146 = vshrl.u32 %v145, 7
    %v147 = vsub.s32 1, %v146
    %v148 = vrot.slane %v24, %v147
    %v149 = vlaneseq
    %v150 = vshrl.u32 %v149, 7
    %v151 = vsub.s32 2, %v150
    %v152 = vrot.slane %v24, %v151
    %v153 = vlaneseq
    %v154 = vshrl.u32 %v153, 7
    %v155 = vsub.s32 3, %v154
    %v156 = vrot.slane %v24, %v155
    %v157 = vlaneseq
    %v158 = vshrl.u32 %v157, 7
    %v159 = vsub.s32 4, %v158
    %v160 = vrot.slane %v24, %v159
    %v161 = vlaneseq
    %v162 = vshrl.u32 %v161, 7
    %v163 = vsub.s32 5, %v162
    %v164 = vrot.slane %v24, %v163
    %v165 = vlaneseq
    %v166 = vshrl.u32 %v165, 7
    %v167 = vsub.s32 6, %v166
    %v168 = vrot.slane %v24, %v167
    %v169 = vlaneseq
    %v170 = vshrl.u32 %v169, 7
    %v171 = vsub.s32 7, %v170
    %v172 = vrot.slane %v24, %v171
    %v173 = vlaneseq
    %v174 = vshrl.u32 %v173, 7
    %v175 = vsub.s32 0, %v174
    %v176 = vrot.slane %v25, %v175
    %v177 = vlaneseq
    %v178 = vshrl.u32 %v177, 7
    %v179 = vsub.s32 1, %v178
    %v180 = vrot.slane %v25, %v179
    %v181 = vlaneseq
    %v182 = vshrl.u32 %v181, 7
    %v183 = vsub.s32 2, %v182
    %v184 = vrot.slane %v25, %v183
    %v185 = vlaneseq
    %v186 = vshrl.u32 %v185, 7
    %v187 = vsub.s32 3, %v186
    %v188 = vrot.slane %v25, %v187
    %v189 = vlaneseq
    %v190 = vshrl.u32 %v189, 7
    %v191 = vsub.s32 4, %v190
    %v192 = vrot.slane %v25, %v191
    %v193 = vlaneseq
    %v194 = vshrl.u32 %v193, 7
    %v195 = vsub.s32 5, %v194
    %v196 = vrot.slane %v25, %v195
    %v197 = vlaneseq
    %v198 = vshrl.u32 %v197, 7
    %v199 = vsub.s32 6, %v198
    %v200 = vrot.slane %v25, %v199
    %v201 = vlaneseq
    %v202 = vshrl.u32 %v201, 7
    %v203 = vsub.s32 7, %v202
    %v204 = vrot.slane %v25, %v203
    %v205 = vlaneseq
    %v206 = vshrl.u32 %v205, 7
    %v207 = vsub.s32 0, %v206
    %v208 = vrot.slane %v26, %v207
    %v209 = vlaneseq
    %v210 = vshrl.u32 %v209, 7
    %v211 = vsub.s32 1, %v210
    %v212 = vrot.slane %v26, %v211
    %v213 = vlaneseq
    %v214 = vshrl.u32 %v213, 7
    %v215 = vsub.s32 2, %v214
    %v216 = vrot.slane %v26, %v215
    %v217 = vlaneseq
    %v218 = vshrl.u32 %v217, 7
    %v219 = vsub.s32 3, %v218
    %v220 = vrot.slane %v26, %v219
    %v221 = vlaneseq
    %v222 = vshrl.u32 %v221, 7
    %v223 = vsub.s32 4, %v222
    %v224 = vrot.slane %v26, %v223
    %v225 = vlaneseq
    %v226 = vshrl.u32 %v225, 7
    %v227 = vsub.s32 5, %v226
    %v228 = vrot.slane %v26, %v227
    %v229 = vlaneseq
    %v230 = vshrl.u32 %v229, 7
    %v231 = vsub.s32 6, %v230
    %v232 = vrot.slane %v26, %v231
    %v233 = vlaneseq
    %v234 = vshrl.u32 %v233, 7
    %v235 = vsub.s32 7, %v234
    %v236 = vrot.slane %v26, %v235
    %v237 = vlaneseq
    %v238 = vshrl.u32 %v237, 7
    %v239 = vsub.s32 0, %v238
    %v240 = vrot.slane %v27, %v239
    %v241 = vlaneseq
    %v242 = vshrl.u32 %v241, 7
    %v243 = vsub.s32 1, %v242
    %v244 = vrot.slane %v27, %v243
    %v245 = vlaneseq
    %v246 = vshrl.u32 %v245, 7
    %v247 = vsub.s32 2, %v246
    %v248 = vrot.slane %v27, %v247
    %v249 = vlaneseq
    %v250 = vshrl.u32 %v249, 7
    %v251 = vsub.s32 3, %v250
    %v252 = vrot.slane %v27, %v251
    %v253 = vlaneseq
    %v254 = vshrl.u32 %v253, 7
    %v255 = vsub.s32 4, %v254
    %v256 = vrot.slane %v27, %v255
    %v257 = vlaneseq
    %v258 = vshrl.u32 %v257, 7
    %v259 = vsub.s32 5, %v258
    %v260 = vrot.slane %v27, %v259
    %v261 = vlaneseq
    %v262 = vshrl.u32 %v261, 7
    %v263 = vsub.s32 6, %v262
    %v264 = vrot.slane %v27, %v263
    %v265 = vlaneseq
    %v266 = vshrl.u32 %v265, 7
    %v267 = vsub.s32 7, %v266
    %v268 = vrot.slane %v27, %v267
    %v269 = vlaneseq
    %v270 = vshrl.u32 %v269, 7
    %v271 = vsub.s32 0, %v270
    %v272 = vrot.slane %v28, %v271
    %v273 = vlaneseq
    %v274 = vshrl.u32 %v273, 7
    %v275 = vsub.s32 1, %v274
    %v276 = vrot.slane %v28, %v275
    %v277 = vlaneseq
    %v278 = vshrl.u32 %v277, 7
    %v279 = vsub.s32 2, %v278
    %v280 = vrot.slane %v28, %v279
    %v281 = vlaneseq
    %v282 = vshrl.u32 %v281, 7
    %v283 = vsub.s32 3, %v282
    %v284 = vrot.slane %v28, %v283
    %v285 = vlaneseq
    %v286 = vshrl.u32 %v285, 7
    %v287 = vsub.s32 4, %v286
    %v288 = vrot.slane %v28, %v287
    %v289 = vlaneseq
    %v290 = vshrl.u32 %v289, 7
    %v291 = vsub.s32 5, %v290
    %v292 = vrot.slane %v28, %v291
    %v293 = vlaneseq
    %v294 = vshrl.u32 %v293, 7
    %v295 = vsub.s32 6, %v294
    %v296 = vrot.slane %v28, %v295
    %v297 = vlaneseq
    %v298 = vshrl.u32 %v297, 7
    %v299 = vsub.s32 7, %v298
    %v300 = vrot.slane %v28, %v299
    %v301 = vlaneseq
    %v302 = vshrl.u32 %v301, 7
    %v303 = vsub.s32 0, %v302
    %v304 = vrot.slane %v29, %v303
    %v305 = vlaneseq
    %v306 = vshrl.u32 %v305, 7
    %v307 = vsub.s32 1, %v306
    %v308 = vrot.slane %v29, %v307
    %v309 = vlaneseq
    %v310 = vshrl.u32 %v309, 7
    %v311 = vsub.s32 2, %v310
    %v312 = vrot.slane %v29, %v311
    %v313 = vlaneseq
    %v314 = vshrl.u32 %v313, 7
    %v315 = vsub.s32 3, %v314
    %v316 = vrot.slane %v29, %v315
    %v317 = vlaneseq
    %v318 = vshrl.u32 %v317, 7
    %v319 = vsub.s32 4, %v318
    %v320 = vrot.slane %v29, %v319
    %v321 = vlaneseq
    %v322 = vshrl.u32 %v321, 7
    %v323 = vsub.s32 5, %v322
    %v324 = vrot.slane %v29, %v323
    %v325 = vlaneseq
    %v326 = vshrl.u32 %v325, 7
    %v327 = vsub.s32 6, %v326
    %v328 = vrot.slane %v29, %v327
    %v329 = vlaneseq
    %v330 = vshrl.u32 %v329, 7
    %v331 = vsub.s32 7, %v330
    %v332 = vrot.slane %v29, %v331
    %v333 = vlaneseq
    %v334 = vshrl.u32 %v333, 7
    %v335 = vsub.s32 0, %v334
    %v336 = vrot.slane %v30, %v335
    %v337 = vlaneseq
    %v338 = vshrl.u32 %v337, 7
    %v339 = vsub.s32 1, %v338
    %v340 = vrot.slane %v30, %v339
    %v341 = vlaneseq
    %v342 = vshrl.u32 %v341, 7
    %v343 = vsub.s32 2, %v342
    %v344 = vrot.slane %v30, %v343
    %v345 = vlaneseq
    %v346 = vshrl.u32 %v345, 7
    %v347 = vsub.s32 3, %v346
    %v348 = vrot.slane %v30, %v347
    %v349 = vlaneseq
    %v350 = vshrl.u32 %v349, 7
    %v351 = vsub.s32 4, %v350
    %v352 = vrot.slane %v30, %v351
    %v353 = vlaneseq
    %v354 = vshrl.u32 %v353, 7
    %v355 = vsub.s32 5, %v354
    %v356 = vrot.slane %v30, %v355
    %v357 = vlaneseq
    %v358 = vshrl.u32 %v357, 7
    %v359 = vsub.s32 6, %v358
    %v360 = vrot.slane %v30, %v359
    %v361 = vlaneseq
    %v362 = vshrl.u32 %v361, 7
    %v363 = vsub.s32 7, %v362
    %v364 = vrot.slane %v30, %v363
    %v365 = vlaneseq
    %v366 = vshrl.u32 %v365, 7
    %v367 = vsub.s32 0, %v366
    %v368 = vrot.slane %v31, %v367
    %v369 = vlaneseq
    %v370 = vshrl.u32 %v369, 7
    %v371 = vsub.s32 1, %v370
    %v372 = vrot.slane %v31, %v371
    %v373 = vlaneseq
    %v374 = vshrl.u32 %v373, 7
    %v375 = vsub.s32 2, %v374
    %v376 = vrot.slane %v31, %v375
    %v377 = vlaneseq
    %v378 = vshrl.u32 %v377, 7
    %v379 = vsub.s32 3, %v378
    %v380 = vrot.slane %v31, %v379
    %v381 = vlaneseq
    %v382 = vshrl.u32 %v381, 7
    %v383 = vsub.s32 4, %v382
    %v384 = vrot.slane %v31, %v383
    %v385 = vlaneseq
    %v386 = vshrl.u32 %v385, 7
    %v387 = vsub.s32 5, %v386
    %v388 = vrot.slane %v31, %v387
    %v389 = vlaneseq
    %v390 = vshrl.u32 %v389, 7
    %v391 = vsub.s32 6, %v390
    %v392 = vrot.slane %v31, %v391
    %v393 = vlaneseq
    %v394 = vshrl.u32 %v393, 7
    %v395 = vsub.s32 7, %v394
    %v396 = vrot.slane %v31, %v395
    %v397 = vlaneseq
    %v398 = vshrl.u32 %v397, 7
    %v399 = vsub.s32 0, %v398
    %v400 = vrot.slane %v32, %v399
    %v401 = vlaneseq
    %v402 = vshrl.u32 %v401, 7
    %v403 = vsub.s32 1, %v402
    %v404 = vrot.slane %v32, %v403
    %v405 = vlaneseq
    %v406 = vshrl.u32 %v405, 7
    %v407 = vsub.s32 2, %v406
    %v408 = vrot.slane %v32, %v407
    %v409 = vlaneseq
    %v410 = vshrl.u32 %v409, 7
    %v411 = vsub.s32 3, %v410
    %v412 = vrot.slane %v32, %v411
    %v413 = vlaneseq
    %v414 = vshrl.u32 %v413, 7
    %v415 = vsub.s32 4, %v414
    %v416 = vrot.slane %v32, %v415
    %v417 = vlaneseq
    %v418 = vshrl.u32 %v417, 7
    %v419 = vsub.s32 5, %v418
    %v420 = vrot.slane %v32, %v419
    %v421 = vlaneseq
    %v422 = vshrl.u32 %v421, 7
    %v423 = vsub.s32 6, %v422
    %v424 = vrot.slane %v32, %v423
    %v425 = vlaneseq
    %v426 = vshrl.u32 %v425, 7
    %v427 = vsub.s32 7, %v426
    %v428 = vrot.slane %v32, %v427
    %525 = vst [vmem:[#allocation5] sm:$0xff] %v48
    %526 = vst [vmem:[#allocation5 + $0x8] sm:$0xff] %v52
    %527 = vst [vmem:[#allocation5 + $0x10] sm:$0xff] %v56
    %528 = vst [vmem:[#allocation5 + $0x18] sm:$0xff] %v60
    %529 = vst [vmem:[#allocation5 + $0x20] sm:$0xff] %v64
    %530 = vst [vmem:[#allocation5 + $0x28] sm:$0xff] %v68
    %531 = vst [vmem:[#allocation5 + $0x30] sm:$0xff] %v72
    %532 = vst [vmem:[#allocation5 + $0x38] sm:$0xff] %v76
    %533 = vst [vmem:[#allocation5 + $0x40] sm:$0xff] %v80
    %534 = vst [vmem:[#allocation5 + $0x48] sm:$0xff] %v84
    %535 = vst [vmem:[#allocation5 + $0x50] sm:$0xff] %v88
    %536 = vst [vmem:[#allocation5 + $0x58] sm:$0xff] %v92
    %537 = vst [vmem:[#allocation5 + $0x60] sm:$0xff] %v96
    %538 = vst [vmem:[#allocation5 + $0x68] sm:$0xff] %v100
    %539 = vst [vmem:[#allocation5 + $0x70] sm:$0xff] %v104
    %540 = vst [vmem:[#allocation5 + $0x78] sm:$0xff] %v108
    %541 = vst [vmem:[#allocation5 + $0x80] sm:$0xff] %v112
    %542 = vst [vmem:[#allocation5 + $0x88] sm:$0xff] %v116
    %543 = vst [vmem:[#allocation5 + $0x90] sm:$0xff] %v120
    %544 = vst [vmem:[#allocation5 + $0x98] sm:$0xff] %v124
    %545 = vst [vmem:[#allocation5 + $0xa0] sm:$0xff] %v128
    %546 = vst [vmem:[#allocation5 + $0xa8] sm:$0xff] %v132
    %547 = vst [vmem:[#allocation5 + $0xb0] sm:$0xff] %v136
    %548 = vst [vmem:[#allocation5 + $0xb8] sm:$0xff] %v140
    %549 = vst [vmem:[#allocation5 + $0xc0] sm:$0xff] %v144
    %550 = vst [vmem:[#allocation5 + $0xc8] sm:$0xff] %v148
    %551 = vst [vmem:[#allocation5 + $0xd0] sm:$0xff] %v152
    %552 = vst [vmem:[#allocation5 + $0xd8] sm:$0xff] %v156
    %553 = vst [vmem:[#allocation5 + $0xe0] sm:$0xff] %v160
    %554 = vst [vmem:[#allocation5 + $0xe8] sm:$0xff] %v164
    %555 = vst [vmem:[#allocation5 + $0xf0] sm:$0xff] %v168
    %556 = vst [vmem:[#allocation5 + $0xf8] sm:$0xff] %v172
    %557 = vst [vmem:[#allocation5 + $0x100] sm:$0xff] %v176
    %558 = vst [vmem:[#allocation5 + $0x108] sm:$0xff] %v180
    %559 = vst [vmem:[#allocation5 + $0x110] sm:$0xff] %v184
    %560 = vst [vmem:[#allocation5 + $0x118] sm:$0xff] %v188
    %561 = vst [vmem:[#allocation5 + $0x120] sm:$0xff] %v192
    %562 = vst [vmem:[#allocation5 + $0x128] sm:$0xff] %v196
    %563 = vst [vmem:[#allocation5 + $0x130] sm:$0xff] %v200
    %564 = vst [vmem:[#allocation5 + $0x138] sm:$0xff] %v204
    %565 = vst [vmem:[#allocation5 + $0x140] sm:$0xff] %v208
    %566 = vst [vmem:[#allocation5 + $0x148] sm:$0xff] %v212
    %567 = vst [vmem:[#allocation5 + $0x150] sm:$0xff] %v216
    %568 = vst [vmem:[#allocation5 + $0x158] sm:$0xff] %v220
    %569 = vst [vmem:[#allocation5 + $0x160] sm:$0xff] %v224
    %570 = vst [vmem:[#allocation5 + $0x168] sm:$0xff] %v228
    %571 = vst [vmem:[#allocation5 + $0x170] sm:$0xff] %v232
    %572 = vst [vmem:[#allocation5 + $0x178] sm:$0xff] %v236
    %573 = vst [vmem:[#allocation5 + $0x180] sm:$0xff] %v240
    %574 = vst [vmem:[#allocation5 + $0x188] sm:$0xff] %v244
    %575 = vst [vmem:[#allocation5 + $0x190] sm:$0xff] %v248
    %576 = vst [vmem:[#allocation5 + $0x198] sm:$0xff] %v252
    %577 = vst [vmem:[#allocation5 + $0x1a0] sm:$0xff] %v256
    %578 = vst [vmem:[#allocation5 + $0x1a8] sm:$0xff] %v260
    %579 = vst [vmem:[#allocation5 + $0x1b0] sm:$0xff] %v264
    %580 = vst [vmem:[#allocation5 + $0x1b8] sm:$0xff] %v268
    %581 = vst [vmem:[#allocation5 + $0x1c0] sm:$0xff] %v272
    %582 = vst [vmem:[#allocation5 + $0x1c8] sm:$0xff] %v276
    %583 = vst [vmem:[#allocation5 + $0x1d0] sm:$0xff] %v280
    %584 = vst [vmem:[#allocation5 + $0x1d8] sm:$0xff] %v284
    %585 = vst [vmem:[#allocation5 + $0x1e0] sm:$0xff] %v288
    %586 = vst [vmem:[#allocation5 + $0x1e8] sm:$0xff] %v292
    %587 = vst [vmem:[#allocation5 + $0x1f0] sm:$0xff] %v296
    %588 = vst [vmem:[#allocation5 + $0x1f8] sm:$0xff] %v300
    %589 = vst [vmem:[#allocation5 + $0x200] sm:$0xff] %v304
    %590 = vst [vmem:[#allocation5 + $0x208] sm:$0xff] %v308
    %591 = vst [vmem:[#allocation5 + $0x210] sm:$0xff] %v312
    %592 = vst [vmem:[#allocation5 + $0x218] sm:$0xff] %v316
    %593 = vst [vmem:[#allocation5 + $0x220] sm:$0xff] %v320
    %594 = vst [vmem:[#allocation5 + $0x228] sm:$0xff] %v324
    %595 = vst [vmem:[#allocation5 + $0x230] sm:$0xff] %v328
    %596 = vst [vmem:[#allocation5 + $0x238] sm:$0xff] %v332
    %597 = vst [vmem:[#allocation5 + $0x240] sm:$0xff] %v336
    %598 = vst [vmem:[#allocation5 + $0x248] sm:$0xff] %v340
    %599 = vst [vmem:[#allocation5 + $0x250] sm:$0xff] %v344
    %600 = vst [vmem:[#allocation5 + $0x258] sm:$0xff] %v348
    %601 = vst [vmem:[#allocation5 + $0x260] sm:$0xff] %v352
    %602 = vst [vmem:[#allocation5 + $0x268] sm:$0xff] %v356
    %603 = vst [vmem:[#allocation5 + $0x270] sm:$0xff] %v360
    %604 = vst [vmem:[#allocation5 + $0x278] sm:$0xff] %v364
    %605 = vst [vmem:[#allocation5 + $0x280] sm:$0xff] %v368
    %606 = vst [vmem:[#allocation5 + $0x288] sm:$0xff] %v372
    %607 = vst [vmem:[#allocation5 + $0x290] sm:$0xff] %v376
    %608 = vst [vmem:[#allocation5 + $0x298] sm:$0xff] %v380
    %609 = vst [vmem:[#allocation5 + $0x2a0] sm:$0xff] %v384
    %610 = vst [vmem:[#allocation5 + $0x2a8] sm:$0xff] %v388
    %611 = vst [vmem:[#allocation5 + $0x2b0] sm:$0xff] %v392
    %612 = vst [vmem:[#allocation5 + $0x2b8] sm:$0xff] %v396
    %613 = vst [vmem:[#allocation5 + $0x2c0] sm:$0xff] %v400
    %614 = vst [vmem:[#allocation5 + $0x2c8] sm:$0xff] %v404
    %615 = vst [vmem:[#allocation5 + $0x2d0] sm:$0xff] %v408
    %616 = vst [vmem:[#allocation5 + $0x2d8] sm:$0xff] %v412
    %617 = vst [vmem:[#allocation5 + $0x2e0] sm:$0xff] %v416
    %618 = vst [vmem:[#allocation5 + $0x2e8] sm:$0xff] %v420
    %619 = vst [vmem:[#allocation5 + $0x2f0] sm:$0xff] %v424
    %620 = vst [vmem:[#allocation5 + $0x2f8] sm:$0xff] %v428
    // Predicated region
    $region10: #{tpu_custom_call.1} parent=1 // pred_check
      _
    $region11: #{tpu_custom_call.1} parent=1 // pred_check_branch
      %622 = sbr.rel (0) target = $region13
    $region12: #{tpu_custom_call.1} parent=1 // pred_region
      %s624 = ssub.s32 12288, 12288
      %625 = vsyncadd [#allocation4], %s624
      %s627 = sshll.u32 [#allocation5], 4
      %s628 = int_to_ptr.vmem [resolvable:$true] %s627
      %630 = dma.vmem_to_hbm [thread:$0]  %s628, 12288, %s1, [#allocation4]
    $region13: #{tpu_custom_call.1} parent=1 // pred_fallthru
      _
    // Predicated region
    $region14: #{tpu_custom_call.1} parent=1 // pred_check
      _
    $region15: #{tpu_custom_call.1} parent=1 // pred_check_branch
      %632 = sbr.rel (0) target = $region17
    $region16: #{tpu_custom_call.1} parent=1 // pred_region
      %633 = dma.done [#allocation4], 12288
    $region17: #{tpu_custom_call.1} parent=1 // pred_fallthru
      _
    %634 = vsyncpa [#allocation3], 1
    %635 = vsyncpa [#allocation4], 1

</llo_original>
